<compile_context>
chip_gen: v7x
topology: tpu7x:2x2x1
jax: 0.10.0
libtpu: 0.0.40
codegen_flags: <defaults>
</compile_context>

<pallas_src>
import math
import functools

import jax
import jax.numpy as jnp
from jax.experimental import pallas as pl
from jax.experimental.pallas import tpu as pltpu


def _round_up(x, m):
    return (x + m - 1) // m * m


def _default_vmem_budget_bytes():
    """Per-generation VMEM budget: <=56 MiB on v7x (64 MiB physical),
    <=96 MiB on v5e/v6e (128 MiB physical); conservative fallback if unknown."""
    cap = 64 * 1024 * 1024          # assume the smallest physical VMEM (v7x)
    try:
        info_cap = int(pltpu.get_tpu_info().vmem_capacity_bytes)
        if info_cap >= 32 * 1024 * 1024:
            cap = info_cap
    except Exception:
        pass
    return max(32 * 1024 * 1024, min(cap - 8 * 1024 * 1024, 96 * 1024 * 1024))


def _select_tiles(*, M, H, I, sub, x_isz, w_isz, o_isz, b_isz,
                  tm_req, tn_req, fit_budget):
    """Pick (tm, tn).  Prefer tn == I (full-width weight tile -> W is streamed
    from HBM exactly once); clamp tm to the VMEM budget and keep >= 2 row tiles
    when possible so the parallel row axis can shard across v7x's 2 TCs."""
    h_r = _round_up(H, 128)

    def vmem_use(tm_e, tn_e):
        tm_r = _round_up(tm_e, sub)
        tn_r = _round_up(tn_e, 128)
        return (2 * tm_r * h_r * x_isz        # x row tile (double buffered)
                + 2 * h_r * tn_r * w_isz      # W column tile (double buffered)
                + 2 * tm_r * tn_r * o_isz     # output tile (double buffered)
                + tm_r * h_r * w_isz          # persistent LN cache scratch
                + 2 * 8 * tn_r * b_isz        # bias tile
                + 2 * 2 * 8 * h_r * 4)        # LN gamma / beta

    def shrink_tm(tm0, tn_e):
        cand = tm0
        while True:
            if vmem_use(cand, tn_e) <= fit_budget:
                return cand
            if cand <= sub:
                return None
            cand = max(sub, _round_up(cand // 2, sub))

    # Row-tile cap: the request, the row count, and >= 2 row tiles when there
    # are enough rows (v7x shards the "parallel" axis across 2 TensorCores).
    tm_cap = _round_up(M, sub)
    if M > sub:
        tm_cap = min(tm_cap, _round_up(pl.cdiv(M, 2), sub))
    tm_cap = max(sub, min(tm_req, tm_cap))

    if tn_req is not None:
        tn_e = min(_round_up(tn_req, 128), I)
        tm_e = shrink_tm(tm_cap, tn_e)
        return (tm_e if tm_e is not None else sub), tn_e

    # Preferred: full-width weight tile (grid[1] == 1 -> single W HBM stream).
    tm_e = shrink_tm(tm_cap, I)
    if tm_e is not None and tm_e >= min(tm_cap, 128):
        return tm_e, I

    # Fallback: W too large for one column tile at a useful row tile; split the
    # output columns (W then re-streams once per row tile).
    # TODO(synk): for very large H*I with modest M, a weight-resident loop
    # order (or two-pass LN->HBM + weight-resident matmul+GELU) would cut HBM
    # traffic further; not implemented here.
    tm_fb = max(sub, min(tm_cap, 256))
    tn_c = _round_up(I, 128)
    while tn_c > 128:
        tn_c = max(128, _round_up(tn_c // 2, 128))
        if vmem_use(tm_fb, tn_c) <= fit_budget:
            return tm_fb, tn_c
    return max(sub, min(tm_cap, 128)), 128


def _saint_intermediate_kernel(x_ref, gamma_ref, beta_ref, w_ref, b_ref,
                               o_ref, xn_ref, *, eps, approximate_gelu):
    # x_ref:     (tm, H)   tile of flattened hidden_states
    # gamma_ref: (1, H)    LayerNorm weight
    # beta_ref:  (1, H)    LayerNorm bias
    # w_ref:     (H, tn)   dense weight tile (torch Linear weight, transposed)
    # b_ref:     (1, tn)   dense bias tile
    # o_ref:     (tm, tn)  output tile
    # xn_ref:    (tm, H)   VMEM scratch caching LayerNorm'd rows in w.dtype
    #
    # NOTE: the xn_ref carry requires the output-column axis (grid axis 1) to
    # be the innermost grid axis with "arbitrary" semantics; LN for a row tile
    # is recomputed exactly when program_id(1) wraps back to 0.
    @pl.when(pl.program_id(1) == 0)
    def _compute_layernorm():
        x = x_ref[...].astype(jnp.float32)
        mean = jnp.mean(x, axis=-1, keepdims=True)
        centered = x - mean
        var = jnp.mean(centered * centered, axis=-1, keepdims=True)
        xn = centered * jax.lax.rsqrt(var + eps)
        xn = (xn * gamma_ref[...].astype(jnp.float32)
              + beta_ref[...].astype(jnp.float32))
        # Store in the matmul dtype: halves the scratch + MXU-feed bytes for
        # bf16 weights and removes a per-column-tile (tm, H) cast.
        xn_ref[...] = xn.astype(xn_ref.dtype)

    # Dense: (tm, H) @ (H, tn) + bias on the MXU, f32 accumulation.
    y = jnp.dot(xn_ref[...], w_ref[...], preferred_element_type=jnp.float32)
    y = y + b_ref[...].astype(jnp.float32)

    if approximate_gelu:
        # tanh GELU routes the transcendental through the EUP slot; use only if
        # the erf polynomial is the VALU-binding unit (v6e/v7x) and the small
        # accuracy deviation from HF exact "gelu" is acceptable.
        c = math.sqrt(2.0 / math.pi)
        out = 0.5 * y * (1.0 + jnp.tanh(c * (y + 0.044715 * y * y * y)))
    else:
        # Exact erf GELU, matching HF ACT2FN["gelu"].
        out = 0.5 * y * (1.0 + jax.lax.erf(y * (1.0 / math.sqrt(2.0))))
    o_ref[...] = out.astype(o_ref.dtype)


def saint_intermediate(hidden_states, ln_gamma, ln_beta, w, b, *,
                       eps=1e-12, tm=512, tn=None,
                       vmem_budget_bytes=None, approximate_gelu=False):
    """Fused LayerNorm + Linear + GELU (SaintIntermediate.forward).

    hidden_states: (B, S, H)
    ln_gamma, ln_beta: (H,)   LayerNorm affine params
    w: (H, I)  dense weight (torch nn.Linear weight, transposed). bf16 weights
               are the recommended configuration on every generation (v5e's
               MXU peak assumes bf16; halves W HBM/VMEM traffic on v6e/v7x).
               Accumulation is always f32.
    b: (I,)    dense bias
    returns: (B, S, I) in hidden_states.dtype

    tm: requested row-tile size (clamped to the VMEM budget and so that the
        "parallel" row axis keeps >= 2 tiles for v7x's dual TensorCores).
    tn: optional output-column tile override; by default it is chosen from the
        VMEM budget and equals the full intermediate width whenever that fits,
        so the weights are streamed from HBM exactly once.
    vmem_budget_bytes: budget used both for tile sizing and as the Mosaic
        scoped-VMEM limit; derived from the detected chip when None.
    """
    B, S, H = hidden_states.shape
    Hw, I = w.shape
    assert Hw == H, "weight must be (hidden_size, intermediate_size)"
    M = B * S

    out_dtype = hidden_states.dtype
    x_isz = jnp.dtype(hidden_states.dtype).itemsize
    w_isz = jnp.dtype(w.dtype).itemsize
    o_isz = jnp.dtype(out_dtype).itemsize
    b_isz = jnp.dtype(b.dtype).itemsize
    # Sublane packing: bf16/fp16 pack 16 rows per vreg, f32 packs 8.
    sub = 16 if min(x_isz, o_isz) <= 2 else 8

    if vmem_budget_bytes is None:
        vmem_budget_bytes = _default_vmem_budget_bytes()
    fit_budget = vmem_budget_bytes - 4 * 1024 * 1024   # Mosaic-internal headroom

    tm_eff, tn_eff = _select_tiles(
        M=M, H=H, I=I, sub=sub, x_isz=x_isz, w_isz=w_isz, o_isz=o_isz,
        b_isz=b_isz, tm_req=tm, tn_req=tn, fit_budget=fit_budget)
    if tm_eff > M:
        tm_eff = M          # single row tile: exact full-dim block is allowed
    if tn_eff > I:
        tn_eff = I          # single column tile: exact full-dim block

    grid = (pl.cdiv(M, tm_eff), pl.cdiv(I, tn_eff))

    # Views only — no wrapper-side padding copies; Pallas handles partial
    # boundary blocks (OOB rows/cols never land in the (M, I) output).
    x2d = hidden_states.reshape(M, H)
    gamma2d = ln_gamma.reshape(1, H)
    beta2d = ln_beta.reshape(1, H)
    b2d = b.reshape(1, I)

    kernel = functools.partial(_saint_intermediate_kernel, eps=eps,
                               approximate_gelu=approximate_gelu)

    # Advisory cost matching the actual streaming pattern: W streams once when
    # grid[1] == 1, otherwise once per row tile.
    w_streams = 1 if grid[1] == 1 else grid[0]
    cost = pl.CostEstimate(
        flops=2 * M * H * I,
        transcendentals=M * I + M,           # one erf per output + rsqrt per row
        bytes_accessed=int(M * H * x_isz + w_streams * H * I * w_isz
                           + M * I * o_isz + I * b_isz + 2 * H * 4),
    )

    out2d = pl.pallas_call(
        kernel,
        out_shape=jax.ShapeDtypeStruct((M, I), out_dtype),
        grid_spec=pltpu.PrefetchScalarGridSpec(
            num_scalar_prefetch=0,
            grid=grid,
            in_specs=[
                # x row tile: block index constant in j -> stays resident across
                # the inner output-column axis (no re-DMA per j).
                pl.BlockSpec((tm_eff, H), lambda i, j: (i, 0)),
                pl.BlockSpec((1, H), lambda i, j: (0, 0)),        # LN gamma
                pl.BlockSpec((1, H), lambda i, j: (0, 0)),        # LN beta
                # Weight tile: with tn_eff == I (the common case) the block
                # index is constant over the whole grid -> W is DMA'd from HBM
                # exactly once for the entire kernel.
                pl.BlockSpec((H, tn_eff), lambda i, j: (0, j)),   # dense weight
                pl.BlockSpec((1, tn_eff), lambda i, j: (0, j)),   # dense bias
            ],
            out_specs=pl.BlockSpec((tm_eff, tn_eff), lambda i, j: (i, j)),
            # Persistent LN cache in the matmul dtype (w.dtype).
            scratch_shapes=[pltpu.VMEM((tm_eff, H), w.dtype)],
        ),
        compiler_params=pltpu.CompilerParams(
            # Row axis parallel (megacore / dual-TC sharding); the column axis
            # must stay innermost + arbitrary because the LN scratch is carried
            # across it.
            dimension_semantics=("parallel", "arbitrary"),
            vmem_limit_bytes=int(vmem_budget_bytes),
        ),
        cost_estimate=cost,
    )(x2d, gamma2d, beta2d, w, b2d)

    return out2d.reshape(B, S, I)


def _reference(hidden_states, ln_gamma, ln_beta, w, b, eps=1e-12):
    x = hidden_states.astype(jnp.float32)
    mean = jnp.mean(x, axis=-1, keepdims=True)
    var = jnp.mean((x - mean) ** 2, axis=-1, keepdims=True)
    xn = (x - mean) * jax.lax.rsqrt(var + eps)
    xn = xn * ln_gamma + ln_beta
    y = xn @ w.astype(jnp.float32) + b.astype(jnp.float32)
    return 0.5 * y * (1.0 + jax.lax.erf(y / math.sqrt(2.0)))


if __name__ == "__main__":
    eps = 1e-12
    key = jax.random.PRNGKey(0)
    k1, k2, k3, k4, k5, k6, k7 = jax.random.split(key, 7)

    # --- Test 1: f32 path, small config (B=2, S=8, H=32, I=128) ---
    B, S, H, I = 2, 8, 32, 128
    hidden_states = jax.random.normal(k1, (B, S, H), dtype=jnp.float32)
    ln_gamma = 1.0 + 0.1 * jax.random.normal(k2, (H,), dtype=jnp.float32)
    ln_beta = 0.1 * jax.random.normal(k3, (H,), dtype=jnp.float32)
    # torch Linear stores weight as (I, H); we keep the transposed (H, I) layout.
    w = 0.05 * jax.random.normal(k4, (H, I), dtype=jnp.float32)
    b = 0.05 * jax.random.normal(k5, (I,), dtype=jnp.float32)

    out = saint_intermediate(hidden_states, ln_gamma, ln_beta, w, b, eps=eps)
    out = jax.block_until_ready(out)
    ref = _reference(hidden_states, ln_gamma, ln_beta, w, b, eps=eps)
    assert out.shape == (B, S, I)
    assert jnp.allclose(out, ref.astype(out.dtype), atol=1e-5, rtol=1e-5), (
        float(jnp.max(jnp.abs(out - ref))))

    # --- Test 2: bf16 activations/weights (recommended MXU configuration) ---
    hs_bf16 = hidden_states.astype(jnp.bfloat16)
    w_bf16 = w.astype(jnp.bfloat16)
    b_bf16 = b.astype(jnp.bfloat16)
    out_bf = saint_intermediate(hs_bf16, ln_gamma, ln_beta, w_bf16, b_bf16,
                                eps=eps)
    out_bf = jax.block_until_ready(out_bf)
    ref_bf = _reference(hs_bf16.astype(jnp.float32), ln_gamma, ln_beta,
                        w_bf16.astype(jnp.float32), b_bf16.astype(jnp.float32),
                        eps=eps)
    assert out_bf.dtype == jnp.bfloat16
    assert jnp.allclose(out_bf.astype(jnp.float32), ref_bf,
                        atol=3e-2, rtol=3e-2), (
        float(jnp.max(jnp.abs(out_bf.astype(jnp.float32) - ref_bf))))

    # --- Test 3: ragged shapes (M, I not multiples of the tile sizes) to
    #     exercise the no-padding boundary-block path ---
    B2, S2, H2, I2 = 2, 7, 32, 96
    x2 = jax.random.normal(k6, (B2, S2, H2), dtype=jnp.float32)
    w2 = 0.05 * jax.random.normal(k7, (H2, I2), dtype=jnp.float32)
    b2 = 0.05 * jnp.ones((I2,), dtype=jnp.float32)
    out2 = saint_intermediate(x2, ln_gamma, ln_beta, w2, b2, eps=eps)
    out2 = jax.block_until_ready(out2)
    ref2 = _reference(x2, ln_gamma, ln_beta, w2, b2, eps=eps)
    assert out2.shape == (B2, S2, I2)
    assert jnp.allclose(out2, ref2.astype(out2.dtype), atol=1e-5, rtol=1e-5), (
        float(jnp.max(jnp.abs(out2 - ref2))))

    print("KERNEL_OK")
</pallas_src>

<mosaic_0001>
module attributes {stable_mosaic.version = 11 : i64} {
  func.func @_saint_intermediate_kernel(%arg0: i32, %arg1: i32, %arg2: memref<8x32xf32, #tpu.memory_space<vmem>>, %arg3: memref<1x32xf32, #tpu.memory_space<vmem>>, %arg4: memref<1x32xf32, #tpu.memory_space<vmem>>, %arg5: memref<32x128xf32, #tpu.memory_space<vmem>>, %arg6: memref<1x128xf32, #tpu.memory_space<vmem>>, %arg7: memref<8x128xf32, #tpu.memory_space<vmem>>, %arg8: memref<8x32xf32, #tpu.memory_space<vmem>>) attributes {dimension_semantics = [#tpu.dimension_semantics<parallel>, #tpu.dimension_semantics<arbitrary>], iteration_bounds = array<i64: 2, 1>, scalar_prefetch = 0 : i64, scratch_operands = 1 : i64, tpu.core_type = #tpu.core_type<tc>, window_params = [{transform_indices = @transform_0, window_bounds = array<i64: 8, 32>}, {pipeline_mode = #tpu.pipeline_mode<synchronous>, transform_indices = @transform_1, window_bounds = array<i64: 1, 32>}, {pipeline_mode = #tpu.pipeline_mode<synchronous>, transform_indices = @transform_2, window_bounds = array<i64: 1, 32>}, {transform_indices = @transform_3, window_bounds = array<i64: 32, 128>}, {transform_indices = @transform_4, window_bounds = array<i64: 1, 128>}, {transform_indices = @transform_5, window_bounds = array<i64: 8, 128>}]} {
    %c0_i32 = arith.constant 0 : i32
    %0 = arith.cmpi eq, %arg1, %c0_i32 : i32
    %1 = arith.extui %0 : i1 to i32
    %c0_i32_0 = arith.constant 0 : i32
    %2 = arith.cmpi ne, %1, %c0_i32_0 : i32
    scf.if %2 {
      %c0_11 = arith.constant 0 : index
      %c0_12 = arith.constant 0 : index
      %18 = vector.load %arg2[%c0_11, %c0_12] : memref<8x32xf32, #tpu.memory_space<vmem>>, vector<8x32xf32>
      %cst_13 = arith.constant dense<0.000000e+00> : vector<8xf32>
      %19 = vector.multi_reduction <add>, %18, %cst_13 [1] : vector<8x32xf32> to vector<8xf32>
      %20 = vector.shape_cast %19 : vector<8xf32> to vector<8x1xf32>
      %cst_14 = arith.constant 3.200000e+01 : f32
      %21 = vector.broadcast %cst_14 : f32 to vector<8x1xf32>
      %22 = arith.divf %20, %21 : vector<8x1xf32>
      %23 = vector.broadcast %22 : vector<8x1xf32> to vector<8x32xf32>
      %24 = arith.subf %18, %23 : vector<8x32xf32>
      %25 = arith.mulf %24, %24 : vector<8x32xf32>
      %cst_15 = arith.constant dense<0.000000e+00> : vector<8xf32>
      %26 = vector.multi_reduction <add>, %25, %cst_15 [1] : vector<8x32xf32> to vector<8xf32>
      %27 = vector.shape_cast %26 : vector<8xf32> to vector<8x1xf32>
      %cst_16 = arith.constant 3.200000e+01 : f32
      %28 = vector.broadcast %cst_16 : f32 to vector<8x1xf32>
      %29 = arith.divf %27, %28 : vector<8x1xf32>
      %cst_17 = arith.constant 9.99999996E-13 : f32
      %30 = vector.broadcast %cst_17 : f32 to vector<8x1xf32>
      %31 = arith.addf %29, %30 : vector<8x1xf32>
      %32 = math.rsqrt %31 : vector<8x1xf32>
      %33 = vector.broadcast %32 : vector<8x1xf32> to vector<8x32xf32>
      %34 = arith.mulf %24, %33 : vector<8x32xf32>
      %c0_18 = arith.constant 0 : index
      %c0_19 = arith.constant 0 : index
      %35 = vector.load %arg3[%c0_18, %c0_19] : memref<1x32xf32, #tpu.memory_space<vmem>>, vector<1x32xf32>
      %36 = vector.broadcast %35 : vector<1x32xf32> to vector<8x32xf32>
      %37 = arith.mulf %34, %36 : vector<8x32xf32>
      %c0_20 = arith.constant 0 : index
      %c0_21 = arith.constant 0 : index
      %38 = vector.load %arg4[%c0_20, %c0_21] : memref<1x32xf32, #tpu.memory_space<vmem>>, vector<1x32xf32>
      %39 = vector.broadcast %38 : vector<1x32xf32> to vector<8x32xf32>
      %40 = arith.addf %37, %39 : vector<8x32xf32>
      %c0_22 = arith.constant 0 : index
      %c0_23 = arith.constant 0 : index
      %41 = vector.load %arg8[%c0_22, %c0_23] : memref<8x32xf32, #tpu.memory_space<vmem>>, vector<8x32xf32>
      tpu.vector_store %arg8[%c0_22, %c0_23], %40 {strides = array<i32>} : memref<8x32xf32, #tpu.memory_space<vmem>>, vector<8x32xf32>,
    } else {
    }
    %c0 = arith.constant 0 : index
    %c0_1 = arith.constant 0 : index
    %3 = vector.load %arg8[%c0, %c0_1] : memref<8x32xf32, #tpu.memory_space<vmem>>, vector<8x32xf32>
    %c0_2 = arith.constant 0 : index
    %c0_3 = arith.constant 0 : index
    %4 = vector.load %arg5[%c0_2, %c0_3] : memref<32x128xf32, #tpu.memory_space<vmem>>, vector<32x128xf32>
    %cst = arith.constant dense<0.000000e+00> : vector<8x128xf32>
    %5 = tpu.matmul %3, %4, %cst {dimension_numbers = #tpu.dot_dimension_numbers<[1], [0], [0], [1], [0, 0, 1, 1], [], []>} : vector<8x32xf32>, vector<32x128xf32>, vector<8x128xf32> -> vector<8x128xf32>
    %c0_4 = arith.constant 0 : index
    %c0_5 = arith.constant 0 : index
    %6 = vector.load %arg6[%c0_4, %c0_5] : memref<1x128xf32, #tpu.memory_space<vmem>>, vector<1x128xf32>
    %7 = vector.broadcast %6 : vector<1x128xf32> to vector<8x128xf32>
    %8 = arith.addf %5, %7 : vector<8x128xf32>
    %cst_6 = arith.constant 5.000000e-01 : f32
    %9 = vector.broadcast %cst_6 : f32 to vector<8x128xf32>
    %10 = arith.mulf %9, %8 : vector<8x128xf32>
    %cst_7 = arith.constant 0.707106769 : f32
    %11 = vector.broadcast %cst_7 : f32 to vector<8x128xf32>
    %12 = arith.mulf %8, %11 : vector<8x128xf32>
    %13 = math.erf %12 : vector<8x128xf32>
    %cst_8 = arith.constant 1.000000e+00 : f32
    %14 = vector.broadcast %cst_8 : f32 to vector<8x128xf32>
    %15 = arith.addf %14, %13 : vector<8x128xf32>
    %16 = arith.mulf %10, %15 : vector<8x128xf32>
    %c0_9 = arith.constant 0 : index
    %c0_10 = arith.constant 0 : index
    %17 = vector.load %arg7[%c0_9, %c0_10] : memref<8x128xf32, #tpu.memory_space<vmem>>, vector<8x128xf32>
    tpu.vector_store %arg7[%c0_9, %c0_10], %16 {strides = array<i32>} : memref<8x128xf32, #tpu.memory_space<vmem>>, vector<8x128xf32>,
    return
  }
  func.func @transform_0(%arg0: i32, %arg1: i32) -> (i32, i32) {
    %c0_i32 = arith.constant 0 : i32
    %c0_i32_0 = arith.constant 0 : i32
    return %arg0, %c0_i32 : i32, i32
  }
  func.func @transform_1(%arg0: i32, %arg1: i32) -> (i32, i32) {
    %c0_i32 = arith.constant 0 : i32
    %c0_i32_0 = arith.constant 0 : i32
    %c0_i32_1 = arith.constant 0 : i32
    return %c0_i32, %c0_i32_0 : i32, i32
  }
  func.func @transform_2(%arg0: i32, %arg1: i32) -> (i32, i32) {
    %c0_i32 = arith.constant 0 : i32
    %c0_i32_0 = arith.constant 0 : i32
    %c0_i32_1 = arith.constant 0 : i32
    return %c0_i32, %c0_i32_0 : i32, i32
  }
  func.func @transform_3(%arg0: i32, %arg1: i32) -> (i32, i32) {
    %c0_i32 = arith.constant 0 : i32
    %c0_i32_0 = arith.constant 0 : i32
    return %c0_i32, %arg1 : i32, i32
  }
  func.func @transform_4(%arg0: i32, %arg1: i32) -> (i32, i32) {
    %c0_i32 = arith.constant 0 : i32
    %c0_i32_0 = arith.constant 0 : i32
    return %c0_i32, %arg1 : i32, i32
  }
  func.func @transform_5(%arg0: i32, %arg1: i32) -> (i32, i32) {
    %c0_i32 = arith.constant 0 : i32
    return %arg0, %arg1 : i32, i32
  }
}

</mosaic_0001>

<llo_original>
// kernel: tpu_custom_call.1
$region0: #{tpu_custom_call.1}
  #allocation0 [shape = 'u32[]', space=smem, size = 0x4, offset = 0x4, fixed_abs, tag = 'smem constant byte address 0x4 - core index']
  #allocation1 [shape = 'u32[144,128]{1,0:T(1,128)}', space=vmem, size = 0x12000, scoped, tag = 'internal scratch']
  #allocation2 [shape = 'f32[8,32]{1,0:T(8,128)}', space=vmem, size = 0x1000, scoped, tag = 'scratch operand']
  %s0 = inlined_call_operand.hbm [shape: f32[16,32], index: 0, kind: input, shape index: {}]
  %s1 = inlined_call_operand.vmem [shape: f32[1,32], index: 1, kind: input, shape index: {}]
  %s2 = inlined_call_operand.vmem [shape: f32[1,32], index: 2, kind: input, shape index: {}]
  %s3 = inlined_call_operand.hbm [shape: f32[32,128], index: 3, kind: input, shape index: {}]
  %s4 = inlined_call_operand.vmem [shape: f32[1,128], index: 4, kind: input, shape index: {}]
  %s5 = inlined_call_operand.hbm [shape: f32[16,128], index: 5, kind: output, shape index: {}]
  %s6 = sld [smem:[#allocation0]]
  $region65: #{tpu_custom_call.1} parent=0
    _
  %s8 = ssub.s32 1, %s6
  %s9 = scalar_select 0, %s8, %s6
  $region1: #{tpu_custom_call.1} parent=0
    #allocation3 [shape = 'u8[8192]{0}', space=vmem, size = 0x2000, scoped, tag = 'input window, operand 0']
    #allocation4 [shape = 's32[2]{0}', space=sflag, size = 0x8, scoped, tag = 'scoped memory for tpu_custom_call.1']
    #allocation5 [shape = 's32[2]{0}', space=sflag, size = 0x8, scoped, tag = 'scoped memory for tpu_custom_call.1']
    #allocation6 [shape = 'u8[16384]{0}', space=vmem, size = 0x4000, scoped, tag = 'input window, operand 3, single buffered']
    #allocation7 [shape = 's32[1]{0}', space=sflag, size = 0x4, scoped, tag = 'scoped memory for tpu_custom_call.1']
    #allocation8 [shape = 'u8[8192]{0}', space=vmem, size = 0x2000, scoped, tag = 'output window, operand 0']
    %10 = vsyncpa [#allocation4], 0
    %s11 = scalar_lea.sflag [#allocation4], 1
    %12 = vsyncpa %s11, 0
    %13 = vsyncpa [#allocation7], 0
    %14 = vsyncpa [#allocation5], 0
    %s15 = scalar_lea.sflag [#allocation5], 1
    %16 = vsyncpa %s15, 0
    loop: start=0, step=1, limit=4
    $region2: #{tpu_custom_call.1} parent=1 // loop_pre_header
      _
    $region3: #{tpu_custom_call.1} parent=1 // loop_header
      %s18 = sphi 0, %s22
      %p19 = scmp.ge.s32.totalorder %s18, 4
      %s25 = sphi 0, %s37
      %s26 = sphi 0, %s33
      %s27 = sphi 0, %s25
      %s28 = sphi 0, %s26
      %s29 = sphi 0, %s27
      %s30 = sphi 0, %s28
      %s40 = sphi 0, %s42
      %s43 = sphi 0, %s40
      %s44 = sphi 0, %s43
      %s60 = sphi 0, %s44
      %s64 = sphi 0, %s64
      %s66 = sphi 0, %s64
      %s67 = sphi 0, %s66
      %s81 = sphi 0, %s67
      %s85 = sphi 0, %s85
      %s87 = sphi 0, %s85
      %s88 = sphi 0, %s87
      %s102 = sphi 0, %s88
      %s108 = sphi 0, %s110
      %s111 = sphi 0, %s108
      %s112 = sphi 0, %s111
      %s128 = sphi 0, %s112
      %s134 = sphi 0, %s136
      %s137 = sphi 0, %s134
      %s138 = sphi 0, %s137
      %s154 = sphi 0, %s138
      %s162 = sphi 0, %s164
      %s165 = sphi 0, %s162
      %s166 = sphi 0, %s165
      %s182 = sphi 0, %s166
    $region4: #{tpu_custom_call.1} parent=1 // loop_header_branch
      %21 = sbr.rel (%p19) target = $region8
    $region5: #{tpu_custom_call.1} parent=1 // loop_body
      %s23 = ssub.s32 %s18, 1
      %s24 = ssub.s32 %s18, 2
      %s31 = sadd.s32 1, %s26
      %p32 = scmp.ge.s32.totalorder %s31, 1
      %s33 = scalar_select %p32, 0, %s31
      %s34 = sadd.s32 1, %s25
      %s35 = scalar_select %p32, %s34, %s25
      %p36 = scmp.ge.s32.totalorder %s35, 2
      %s37 = scalar_select %p36, 0, %s35
      %s38 = ssub.s32 %s25, %s37
      %p39 = scmp.eq.s32.totalorder %s38, 0
      %s41 = sadd.s32 %s40, 1
      %s42 = scalar_select %p39, %s40, %s41
      %p45 = pneg %p39
      %p46 = scmp.eq.s32.totalorder %s18, 1
      %p47 = por %p45, %p46
      %p48 = scmp.ne.s32.totalorder %s40, %s43
      %p49 = scmp.eq.s32.totalorder %s18, 0
      %p50 = por %p48, %p49
      %p51 = scmp.ne.s32.totalorder %s40, %s43
      %p52 = scmp.eq.s32.totalorder %s23, 1
      %p53 = por %p51, %p52
      %p54 = scmp.ne.s32.totalorder %s43, %s44
      %p55 = scmp.eq.s32.totalorder %s23, 0
      %p56 = por %p54, %p55
      %p57 = scmp.ne.s32.totalorder %s43, %s44
      %p58 = scmp.eq.s32.totalorder %s24, 1
      %p59 = por %p57, %p58
      %p61 = scmp.ne.s32.totalorder %s44, %s60
      %p62 = scmp.eq.s32.totalorder %s24, 0
      %p63 = por %p61, %p62
      %s65 = sadd.s32 %s64, 1
      %p68 = scmp.eq.s32.totalorder %s18, 1
      %p69 = scmp.ne.s32.totalorder %s64, %s66
      %p70 = scmp.eq.s32.totalorder %s18, 0
      %p71 = por %p69, %p70
      %p72 = scmp.ne.s32.totalorder %s64, %s66
      %p73 = scmp.eq.s32.totalorder %s23, 1
      %p74 = por %p72, %p73
      %p75 = scmp.ne.s32.totalorder %s66, %s67
      %p76 = scmp.eq.s32.totalorder %s23, 0
      %p77 = por %p75, %p76
      %p78 = scmp.ne.s32.totalorder %s66, %s67
      %p79 = scmp.eq.s32.totalorder %s24, 1
      %p80 = por %p78, %p79
      %p82 = scmp.ne.s32.totalorder %s67, %s81
      %p83 = scmp.eq.s32.totalorder %s24, 0
      %p84 = por %p82, %p83
      %s86 = sadd.s32 %s85, 1
      %p89 = scmp.eq.s32.totalorder %s18, 1
      %p90 = scmp.ne.s32.totalorder %s85, %s87
      %p91 = scmp.eq.s32.totalorder %s18, 0
      %p92 = por %p90, %p91
      %p93 = scmp.ne.s32.totalorder %s85, %s87
      %p94 = scmp.eq.s32.totalorder %s23, 1
      %p95 = por %p93, %p94
      %p96 = scmp.ne.s32.totalorder %s87, %s88
      %p97 = scmp.eq.s32.totalorder %s23, 0
      %p98 = por %p96, %p97
      %p99 = scmp.ne.s32.totalorder %s87, %s88
      %p100 = scmp.eq.s32.totalorder %s24, 1
      %p101 = por %p99, %p100
      %p103 = scmp.ne.s32.totalorder %s88, %s102
      %p104 = scmp.eq.s32.totalorder %s24, 0
      %p105 = por %p103, %p104
      %s106 = ssub.s32 %s26, %s33
      %p107 = scmp.eq.s32.totalorder %s106, 0
      %s109 = sadd.s32 %s108, 1
      %s110 = scalar_select %p107, %s108, %s109
      %p113 = pneg %p107
      %p114 = scmp.eq.s32.totalorder %s18, 1
      %p115 = por %p113, %p114
      %p116 = scmp.ne.s32.totalorder %s108, %s111
      %p117 = scmp.eq.s32.totalorder %s18, 0
      %p118 = por %p116, %p117
      %p119 = scmp.ne.s32.totalorder %s108, %s111
      %p120 = scmp.eq.s32.totalorder %s23, 1
      %p121 = por %p119, %p120
      %p122 = scmp.ne.s32.totalorder %s111, %s112
      %p123 = scmp.eq.s32.totalorder %s23, 0
      %p124 = por %p122, %p123
      %p125 = scmp.ne.s32.totalorder %s111, %s112
      %p126 = scmp.eq.s32.totalorder %s24, 1
      %p127 = por %p125, %p126
      %p129 = scmp.ne.s32.totalorder %s112, %s128
      %p130 = scmp.eq.s32.totalorder %s24, 0
      %p131 = por %p129, %p130
      %s132 = ssub.s32 %s26, %s33
      %p133 = scmp.eq.s32.totalorder %s132, 0
      %s135 = sadd.s32 %s134, 1
      %s136 = scalar_select %p133, %s134, %s135
      %p139 = pneg %p133
      %p140 = scmp.eq.s32.totalorder %s18, 1
      %p141 = por %p139, %p140
      %p142 = scmp.ne.s32.totalorder %s134, %s137
      %p143 = scmp.eq.s32.totalorder %s18, 0
      %p144 = por %p142, %p143
      %p145 = scmp.ne.s32.totalorder %s134, %s137
      %p146 = scmp.eq.s32.totalorder %s23, 1
      %p147 = por %p145, %p146
      %p148 = scmp.ne.s32.totalorder %s137, %s138
      %p149 = scmp.eq.s32.totalorder %s23, 0
      %p150 = por %p148, %p149
      %p151 = scmp.ne.s32.totalorder %s137, %s138
      %p152 = scmp.eq.s32.totalorder %s24, 1
      %p153 = por %p151, %p152
      %p155 = scmp.ne.s32.totalorder %s138, %s154
      %p156 = scmp.eq.s32.totalorder %s24, 0
      %p157 = por %p155, %p156
      %s158 = ssub.s32 %s25, %s37
      %s159 = ssub.s32 %s26, %s33
      %s160 = sor.u32 %s158, %s159
      %p161 = scmp.eq.s32.totalorder %s160, 0
      %s163 = sadd.s32 %s162, 1
      %s164 = scalar_select %p161, %s162, %s163
      %p167 = pneg %p161
      %p168 = scmp.eq.s32.totalorder %s18, 1
      %p169 = por %p167, %p168
      %p170 = scmp.ne.s32.totalorder %s162, %s165
      %p171 = scmp.eq.s32.totalorder %s18, 0
      %p172 = por %p170, %p171
      %p173 = scmp.ne.s32.totalorder %s162, %s165
      %p174 = scmp.eq.s32.totalorder %s23, 1
      %p175 = por %p173, %p174
      %p176 = scmp.ne.s32.totalorder %s165, %s166
      %p177 = scmp.eq.s32.totalorder %s23, 0
      %p178 = por %p176, %p177
      %p179 = scmp.ne.s32.totalorder %s165, %s166
      %p180 = scmp.eq.s32.totalorder %s24, 1
      %p181 = por %p179, %p180
      %p183 = scmp.ne.s32.totalorder %s166, %s182
      %p184 = scmp.eq.s32.totalorder %s24, 0
      %p185 = por %p183, %p184
      %p186 = scmp.le.s32.totalorder 1, %s18
      %p187 = scmp.lt.s32.totalorder %s18, 3
      %p188 = pnand %p186, %p187
      %p189 = pneg %p188
      // Predicated region
      $region9: #{tpu_custom_call.1} parent=5 // pred_check
        _
      $region10: #{tpu_custom_call.1} parent=5 // pred_check_branch
        %191 = sbr.rel (%p188) target = $region12
      $region11: #{tpu_custom_call.1} parent=5 // pred_region
        %s192 = ssub.s32 %s18, 1
        // Predicated region
        $region13: #{tpu_custom_call.1} parent=11 // pred_check
          %p193 = pneg %p77
        $region14: #{tpu_custom_call.1} parent=11 // pred_check_branch
          %195 = sbr.rel (%p193) target = $region16
        $region15: #{tpu_custom_call.1} parent=11 // pred_region
          _
        $region16: #{tpu_custom_call.1} parent=11 // pred_fallthru
          _
        // Predicated region
        $region17: #{tpu_custom_call.1} parent=11 // pred_check
          %p196 = pneg %p98
        $region18: #{tpu_custom_call.1} parent=11 // pred_check_branch
          %198 = sbr.rel (%p196) target = $region20
        $region19: #{tpu_custom_call.1} parent=11 // pred_region
          _
        $region20: #{tpu_custom_call.1} parent=11 // pred_fallthru
          _
        // Predicated region
        $region21: #{tpu_custom_call.1} parent=11 // pred_check
          %p199 = pneg %p124
        $region22: #{tpu_custom_call.1} parent=11 // pred_check_branch
          %201 = sbr.rel (%p199) target = $region24
        $region23: #{tpu_custom_call.1} parent=11 // pred_region
          %s203 = ssub.s32 512, 512
          %204 = vsyncadd [#allocation7], %s203
          %s205 = smul.addr %s28, 128
          %s206 = scalar_lea.hbm %s3, %s205
          %s207 = sshll.u32 [#allocation6], 4
          %s208 = int_to_ptr.vmem [resolvable:$true] %s207
          %213 = dma.hbm_to_vmem [thread:$0]  %s206, 512, %s208, [#allocation7], 128, 128, 8
        $region24: #{tpu_custom_call.1} parent=11 // pred_fallthru
          _
        // Predicated region
        $region25: #{tpu_custom_call.1} parent=11 // pred_check
          %p214 = pneg %p150
        $region26: #{tpu_custom_call.1} parent=11 // pred_check_branch
          %216 = sbr.rel (%p214) target = $region28
        $region27: #{tpu_custom_call.1} parent=11 // pred_region
          %p217 = scmp.lt.s32.totalorder %s28, 0
          %s218 = scalar_select %p217, %s28, 0
          %s219 = scalar_lea.vmem %s4, %s218
        $region28: #{tpu_custom_call.1} parent=11 // pred_fallthru
          _
      $region12: #{tpu_custom_call.1} parent=5 // pred_fallthru
        _
      %p220 = scmp.lt.s32.totalorder %s18, 2
      // Predicated region
      $region29: #{tpu_custom_call.1} parent=5 // pred_check
        %p221 = pneg %p220
      $region30: #{tpu_custom_call.1} parent=5 // pred_check_branch
        %223 = sbr.rel (%p221) target = $region32
      $region31: #{tpu_custom_call.1} parent=5 // pred_region
        // Predicated region
        $region33: #{tpu_custom_call.1} parent=31 // pred_check
          %p224 = pneg %p50
        $region34: #{tpu_custom_call.1} parent=31 // pred_check_branch
          %226 = sbr.rel (%p224) target = $region36
        $region35: #{tpu_custom_call.1} parent=31 // pred_region
          %s227 = sand.u32 %s40, 1
          %s228 = scalar_lea.sflag [#allocation4], %s227
          %s229 = sand.u32 %s40, 1
          %s230 = smul.addr %s229, 8
          %s231 = scalar_lea.vmem [#allocation3], %s230
          %s233 = ssub.s32 128, 128
          %234 = vsyncadd %s228, %s233
          %s235 = smul.addr %s25, 128
          %s236 = scalar_lea.hbm %s0, %s235
          %s238 = sshll.u32 %s231, 4
          %s239 = int_to_ptr.vmem [resolvable:$true] %s238
          %241 = dma.hbm_to_vmem [thread:$0]  %s236, 128, %s239, %s228
        $region36: #{tpu_custom_call.1} parent=31 // pred_fallthru
          _
      $region32: #{tpu_custom_call.1} parent=5 // pred_fallthru
        _
      %p242 = scmp.le.s32.totalorder 1, %s18
      %p243 = scmp.lt.s32.totalorder %s18, 3
      %p244 = pnand %p242, %p243
      %p245 = pneg %p244
      // Predicated region
      $region37: #{tpu_custom_call.1} parent=5 // pred_check
        _
      $region38: #{tpu_custom_call.1} parent=5 // pred_check_branch
        %247 = sbr.rel (%p244) target = $region40
      $region39: #{tpu_custom_call.1} parent=5 // pred_region
        %s248 = ssub.s32 %s18, 1
        %s249 = sand.u32 %s43, 1
        %s250 = scalar_lea.sflag [#allocation4], %s249
        %s251 = sand.u32 %s43, 1
        %s252 = smul.addr %s251, 8
        %s253 = scalar_lea.vmem [#allocation3], %s252
        // Predicated region
        $region41: #{tpu_custom_call.1} parent=39 // pred_check
          %p254 = pneg %p56
        $region42: #{tpu_custom_call.1} parent=39 // pred_check_branch
          %256 = sbr.rel (%p254) target = $region44
        $region43: #{tpu_custom_call.1} parent=39 // pred_region
          %257 = dma.done %s250, 128
        $region44: #{tpu_custom_call.1} parent=39 // pred_fallthru
          _
        // Predicated region
        $region45: #{tpu_custom_call.1} parent=39 // pred_check
          %p258 = pneg %p124
        $region46: #{tpu_custom_call.1} parent=39 // pred_check_branch
          %260 = sbr.rel (%p258) target = $region48
        $region47: #{tpu_custom_call.1} parent=39 // pred_region
          %261 = dma.done [#allocation7], 512
        $region48: #{tpu_custom_call.1} parent=39 // pred_fallthru
          _
        %s262 = sand.u32 %s43, 1
        %s263 = scalar_lea.sflag [#allocation4], %s262
        %s264 = sand.u32 %s43, 1
        %s265 = smul.addr %s264, 8
        %s266 = scalar_lea.vmem [#allocation3], %s265
        %p267 = pneg %p56
        %p268 = pneg %p53
        %p269 = pneg %p77
        %p270 = pneg %p74
        %p271 = pneg %p98
        %p272 = pneg %p95
        %p273 = pneg %p124
        %p274 = pneg %p121
        %p275 = scmp.lt.s32.totalorder %s28, 0
        %s276 = scalar_select %p275, %s28, 0
        %s277 = scalar_lea.vmem %s4, %s276
        %p278 = pneg %p150
        %p279 = pneg %p147
        %p280 = pneg %p178
        %p281 = pneg %p175
        %s282 = sand.u32 %s165, 1
        %s283 = scalar_lea.sflag [#allocation5], %s282
        %s284 = sand.u32 %s165, 1
        %s285 = smul.addr %s284, 8
        %s286 = scalar_lea.vmem [#allocation8], %s285
        %p287 = scmp.lt.s32.totalorder %s28, 0
        %s288 = scalar_select %p287, %s28, 0
        %s289 = scalar_lea.vmem %s4, %s288
        %p290 = scmp.eq.s32.totalorder %s28, 0
        // Predicated region
        $region49: #{tpu_custom_call.1} parent=39 // pred_check
          %p291 = pneg %p290
        $region50: #{tpu_custom_call.1} parent=39 // pred_check_branch
          %293 = sbr.rel (%p291) target = $region52
        $region51: #{tpu_custom_call.1} parent=39 // pred_region
          %v294 = vld [vmem:[%s253] sm:$0xff]
          %vm295 = vcmask 261120
          %v296 = vsel %vm295, %v294, 0.0
          %297 = vadd.xlane.f32.xlu0 %v296
          %v298 = vpop.xlane.xlu0 %297
          %v299 = vrcp.pop 32.0
          %v300 = vmul.f32 %v298, %v299
          %v301 = vsub.f32 %v294, %v300
          %v302 = vmul.f32 %v301, %v301
          %v303 = vsel %vm295, %v302, 0.0
          %304 = vadd.xlane.f32.xlu0 %v303
          %v305 = vpop.xlane.xlu0 %304
          %v306 = vmul.f32 %v305, %v299
          %v307 = vadd.f32 %v306, 1e-12
          %v308 = vrsqrt.pop %v307
          %v309 = vmul.f32 %v301, %v308
          %v310 = vld [vmem:[%s1] sm:$0x1]
          %v312 = vlaneseq
          %v313 = vshrl.u32 %v312, 7
          %v314 = vsub.s32 0, %v313
          %v315 = vrot.slane %v310, %v314
          %v317 = vmul.f32 %v309, %v315
          %v318 = vld [vmem:[%s2] sm:$0x1]
          %v320 = vlaneseq
          %v321 = vshrl.u32 %v320, 7
          %v322 = vsub.s32 0, %v321
          %v323 = vrot.slane %v318, %v322
          %v325 = vadd.f32 %v317, %v323
          %326 = vst.msk [vmem:[#allocation2] sm:$0xff] %vm295, %v325
        $region52: #{tpu_custom_call.1} parent=39 // pred_fallthru
          _
        %v327 = vld [vmem:[#allocation2] sm:$0xff]
        %v328 = vld [vmem:[#allocation6] sm:$0xff]
        %v329 = vld [vmem:[#allocation6 + $0x8] sm:$0xff]
        %v330 = vld [vmem:[#allocation6 + $0x10] sm:$0xff]
        %v331 = vld [vmem:[#allocation6 + $0x18] sm:$0xff]
        %v332 = vld [vmem:[%s289] sm:$0x1]
        %v334 = vlaneseq
        %v335 = vshrl.u32 %v334, 7
        %v336 = vsub.s32 0, %v335
        %v337 = vrot.slane %v332, %v336
        %vm339 = vcmask 261120
        %v341 = vsel %vm339, %v327, 0
        %343 = vmatprep.subr.mxu0 0.0
        %344 = vmatpush1.msra.mxu0 %v328
        %345 = vmatprep.subr.mxu0 0.0
        %346 = vmatpush1.msra.mxu0 %v329
        %347 = vmatprep.subr.mxu0 0.0
        %348 = vmatpush1.msra.mxu0 %v330
        %349 = vmatprep.subr.mxu0 0.0
        %350 = vmatpush1.msra.mxu0 %v331
        %351 = vmatprep.subr.mxu0 0.0
        %352 = vmatpush1.msra.mxu0 0.0
        %353 = vmatprep.subr.mxu0 0.0
        %354 = vmatpush1.msra.mxu0 0.0
        %355 = vmatprep.subr.mxu0 0.0
        %356 = vmatpush1.msra.mxu0 0.0
        %357 = vmatprep.subr.mxu0 0.0
        %358 = vmatpush1.msra.mxu0 0.0
        %359 = vmatprep.subr.mxu0 0.0
        %360 = vmatpush1.msra.mxu0 0.0
        %361 = vmatprep.subr.mxu0 0.0
        %362 = vmatpush1.msra.mxu0 0.0
        %363 = vmatprep.subr.mxu0 0.0
        %364 = vmatpush1.msra.mxu0 0.0
        %365 = vmatprep.subr.mxu0 0.0
        %366 = vmatpush1.msra.mxu0 0.0
        %367 = vmatprep.subr.mxu0 0.0
        %368 = vmatpush1.msra.mxu0 0.0
        %369 = vmatprep.subr.mxu0 0.0
        %370 = vmatpush1.msra.mxu0 0.0
        %371 = vmatprep.subr.mxu0 0.0
        %372 = vmatpush1.msra.mxu0 0.0
        %373 = vmatprep.subr.mxu0 0.0
        %374 = vmatpush1.msra.mxu0 0.0
        %375 = vmatprep.subr.mxu0 0.0
        %376 = vmatpush1.msra.mxu0 0.0
        %377 = vmatprep.subr.mxu0 0.0
        %378 = vmatpush1.msra.mxu0 0.0
        %379 = vmatprep.subr.mxu0 0.0
        %380 = vmatpush1.msra.mxu0 0.0
        %381 = vmatprep.subr.mxu0 0.0
        %382 = vmatpush1.msra.mxu0 0.0
        %383 = vmatprep.subr.mxu0 0.0
        %384 = vmatpush1.msra.mxu0 0.0
        %385 = vmatprep.subr.mxu0 0.0
        %386 = vmatpush1.msra.mxu0 0.0
        %387 = vmatprep.subr.mxu0 0.0
        %388 = vmatpush1.msra.mxu0 0.0
        %389 = vmatprep.subr.mxu0 0.0
        %390 = vmatpush1.msra.mxu0 0.0
        %391 = vmatprep.subr.mxu0 0.0
        %392 = vmatpush1.msra.mxu0 0.0
        %393 = vmatprep.subr.mxu0 0.0
        %394 = vmatpush1.msra.mxu0 0.0
        %395 = vmatprep.subr.mxu0 0.0
        %396 = vmatpush1.msra.mxu0 0.0
        %397 = vmatprep.subr.mxu0 0.0
        %398 = vmatpush1.msra.mxu0 0.0
        %399 = vmatprep.subr.mxu0 0.0
        %400 = vmatpush1.msra.mxu0 0.0
        %401 = vmatprep.subr.mxu0 0.0
        %402 = vmatpush1.msra.mxu0 0.0
        %403 = vmatprep.subr.mxu0 0.0
        %404 = vmatpush1.msra.mxu0 0.0
        %405 = vmatprep.subr.mxu0 0.0
        %406 = vmatpush1.msra.mxu0 0.0
        %407 = vmatprep.mubr.f32.mxu0 0.0
        %408 = vmatmul.mubr.f32.gmra.mrb[0].mxu0 %v341
        %v409 = vpop.f32.mrb[0].mxu0
        %v410 = vadd.f32 %v337, %v409
        %v411 = vpop.f32.mrb[0].mxu0
        %412 = vdwg.mxu0
        %v413 = vmul.f32 %v410, 0.5
        %v414 = vmul.f32 %v410, 0.70710677
        %v415 = verf.f32.pop %v414
        %v416 = vadd.f32 %v415, 1.0
        %v417 = vmul.f32 %v413, %v416
        %418 = vst [vmem:[%s286] sm:$0xff] %v417
        %s419 = sand.u32 %s165, 1
        %s420 = scalar_lea.sflag [#allocation5], %s419
        %s421 = sand.u32 %s165, 1
        %s422 = smul.addr %s421, 8
        %s423 = scalar_lea.vmem [#allocation8], %s422
        // Predicated region
        $region53: #{tpu_custom_call.1} parent=39 // pred_check
          %p424 = pneg %p175
        $region54: #{tpu_custom_call.1} parent=39 // pred_check_branch
          %426 = sbr.rel (%p424) target = $region56
        $region55: #{tpu_custom_call.1} parent=39 // pred_region
          %s428 = ssub.s32 128, 128
          %429 = vsyncadd %s420, %s428
          %s430 = sadd.s32 %s28, %s27
          %s431 = smul.addr %s430, 128
          %s432 = scalar_lea.hbm %s5, %s431
          %s434 = sshll.u32 %s423, 4
          %s435 = int_to_ptr.vmem [resolvable:$true] %s434
          %437 = dma.vmem_to_hbm [thread:$0]  %s435, 128, %s432, %s420
        $region56: #{tpu_custom_call.1} parent=39 // pred_fallthru
          _
      $region40: #{tpu_custom_call.1} parent=5 // pred_fallthru
        _
      %p438 = scmp.le.s32.totalorder 2, %s18
      // Predicated region
      $region57: #{tpu_custom_call.1} parent=5 // pred_check
        %p439 = pneg %p438
      $region58: #{tpu_custom_call.1} parent=5 // pred_check_branch
        %441 = sbr.rel (%p439) target = $region60
      $region59: #{tpu_custom_call.1} parent=5 // pred_region
        %s442 = ssub.s32 %s18, 2
        // Predicated region
        $region61: #{tpu_custom_call.1} parent=59 // pred_check
          %p443 = pneg %p181
        $region62: #{tpu_custom_call.1} parent=59 // pred_check_branch
          %445 = sbr.rel (%p443) target = $region64
        $region63: #{tpu_custom_call.1} parent=59 // pred_region
          %s446 = sand.u32 %s166, 1
          %s447 = scalar_lea.sflag [#allocation5], %s446
          %s448 = sand.u32 %s166, 1
          %s449 = smul.addr %s448, 8
          %s450 = scalar_lea.vmem [#allocation8], %s449
          %451 = dma.done %s447, 128
        $region64: #{tpu_custom_call.1} parent=59 // pred_fallthru
          _
      $region60: #{tpu_custom_call.1} parent=5 // pred_fallthru
        _
    $region6: #{tpu_custom_call.1} parent=1 // loop_footer
      %s22 = sadd.s32 1, %s18
    $region7: #{tpu_custom_call.1} parent=1 // loop_footer_branch
      %17 = sbr.rel target = $region3
    $region8: #{tpu_custom_call.1} parent=1 // loop_exit
      _
    %452 = vsyncpa [#allocation4], 1
    %s453 = scalar_lea.sflag [#allocation4], 1
    %454 = vsyncpa %s453, 1
    %455 = vsyncpa [#allocation7], 1
    %456 = vsyncpa [#allocation5], 1
    %s457 = scalar_lea.sflag [#allocation5], 1
    %458 = vsyncpa %s457, 1

</llo_original>
